<compile_context>
chip_gen: v5e
topology: v5e:2x2
jax: 0.10.0
libtpu: 0.0.40
codegen_flags: <defaults>
</compile_context>

<pallas_src>
import jax
import jax.numpy as jnp
from jax.experimental import pallas as pl
from jax.experimental.pallas import tpu as pltpu


# ----------------------------- kernel ---------------------------------------


def mlp_kernel(x_ref, w0_ref, b0_ref, w1_ref, b1_ref, w2_ref, b2_ref, o_ref):
    # x_ref: [TB, 784] f32 (cast to bf16 here so x is read from HBM only once)
    # w0: [784,128] bf16   w1: [128,64] bf16   w2: [64,10] bf16
    # b*: [1, N] f32       o_ref: [TB, 10] f32
    x = x_ref[...].astype(jnp.bfloat16)

    # hidden_0 + ReLU (dropout(0.25) = identity in eval). f32 accumulation on the MXU.
    h0 = jnp.dot(x, w0_ref[...], preferred_element_type=jnp.float32) + b0_ref[...]
    h0 = jnp.maximum(h0, 0.0).astype(jnp.bfloat16)

    # hidden_1 + ReLU (dropout = identity in eval)
    h1 = jnp.dot(h0, w1_ref[...], preferred_element_type=jnp.float32) + b1_ref[...]
    h1 = jnp.maximum(h1, 0.0).astype(jnp.bfloat16)

    # output layer (keep logits in f32 for a stable log-softmax)
    logits = jnp.dot(h1, w2_ref[...], preferred_element_type=jnp.float32) + b2_ref[...]

    # LogSoftmax along dim=1 (numerically stable, max-shifted)
    m = jnp.max(logits, axis=-1, keepdims=True)
    shifted = logits - m
    lse = jnp.log(jnp.sum(jnp.exp(shifted), axis=-1, keepdims=True))
    o_ref[...] = (shifted - lse).astype(o_ref.dtype)


# ----------------------------- wrapper ---------------------------------------

TB_MAX_DEFAULT = 2048              # f32 x double-buffer: 2*2048*784*4B ~= 12.9 MiB
VMEM_LIMIT_BYTES = 48 * 1024 * 1024  # fits v5e/v6e; headroom under v7x 64 MiB/TC


def _round_up(x, m):
    return (x + m - 1) // m * m


def _choose_tb(b, tb_max):
    """Pick the batch tile: big enough to amortize the ~0.35us per-grid-step
    overhead, small enough to (a) fit the VMEM budget and (b) give >= 4 grid
    steps (>= 2 per TensorCore on v7x megacore) so the parallel grid balances."""
    if b <= 256:
        return max(8, _round_up(b, 8))          # single tile
    tb = _round_up(pl.cdiv(b, 4), 8)            # aim for >= 4 tiles
    return max(256, min(tb, tb_max))


def prepare_params(params):
    """One-time weight/bias preparation (hoisted out of the per-call path):
    weights -> bf16 [in, out], biases -> f32 [1, out]."""
    w0, b0, w1, b1, w2, b2 = params
    return (
        w0.astype(jnp.bfloat16), b0.reshape(1, -1).astype(jnp.float32),
        w1.astype(jnp.bfloat16), b1.reshape(1, -1).astype(jnp.float32),
        w2.astype(jnp.bfloat16), b2.reshape(1, -1).astype(jnp.float32),
    )


def network_forward(x_nchw, prepared, *, tb_max=TB_MAX_DEFAULT):
    """x_nchw: [B, 1, 28, 28] float32 -> log-probs [B, 10] float32 (eval mode)."""
    b = x_nchw.shape[0]
    w0b, b0r, w1b, b1r, w2b, b2r = prepared

    # torch x.view(B, -1): free row-major reshape; stays f32 (cast fused in-kernel).
    x2 = x_nchw.reshape(b, -1)                       # [B, 784] f32

    tb = _choose_tb(b, tb_max)
    grid = (pl.cdiv(b, tb),)   # ragged last block: OOB rows compute on garbage,
                               # their writes are dropped (rows are independent).

    flops = 2 * b * (784 * 128 + 128 * 64 + 64 * 10)
    bytes_accessed = (
        b * 784 * 4                                  # x (f32, streamed once)
        + (784 * 128 + 128 * 64 + 64 * 10) * 2       # weights (bf16, resident)
        + (128 + 64 + 10) * 4                        # biases (f32)
        + b * 10 * 4                                 # output (f32)
    )

    out = pl.pallas_call(
        mlp_kernel,
        out_shape=jax.ShapeDtypeStruct((b, 10), jnp.float32),
        grid=grid,
        in_specs=[
            # x: one batch tile per grid step (pipelined / double-buffered)
            pl.BlockSpec((tb, 784), lambda i: (i, 0)),
            # weights / biases: constant block index -> resident in VMEM
            pl.BlockSpec((784, 128), lambda i: (0, 0)),
            pl.BlockSpec((1, 128), lambda i: (0, 0)),
            pl.BlockSpec((128, 64), lambda i: (0, 0)),
            pl.BlockSpec((1, 64), lambda i: (0, 0)),
            pl.BlockSpec((64, 10), lambda i: (0, 0)),
            pl.BlockSpec((1, 10), lambda i: (0, 0)),
        ],
        out_specs=pl.BlockSpec((tb, 10), lambda i: (i, 0)),
        compiler_params=pltpu.CompilerParams(
            dimension_semantics=("parallel",),       # shard batch tiles across TCs
            vmem_limit_bytes=VMEM_LIMIT_BYTES,
        ),
        cost_estimate=pl.CostEstimate(
            flops=flops,
            transcendentals=b * 11,                  # 10x exp + 1x log per row
            bytes_accessed=bytes_accessed,
        ),
    )(x2, w0b, b0r, w1b, b1r, w2b, b2r)
    return out


# ----------------------------- references / init -----------------------------


def init_params(key):
    """Deterministic init mimicking PyTorch Linear default (U[-1/sqrt(fan_in), +])."""
    sizes = [(784, 128), (128, 64), (64, 10)]
    params = []
    for (fan_in, fan_out) in sizes:
        key, kw, kb = jax.random.split(key, 3)
        bound = 1.0 / jnp.sqrt(fan_in)
        w = jax.random.uniform(kw, (fan_in, fan_out), jnp.float32, -bound, bound)
        bvec = jax.random.uniform(kb, (fan_out,), jnp.float32, -bound, bound)
        params += [w, bvec]
    return tuple(params)


def reference_forward_f32(x_nchw, params):
    """Plain-JAX f32 reference of the same forward (eval mode)."""
    w0, b0, w1, b1, w2, b2 = params
    x = x_nchw.reshape(x_nchw.shape[0], -1)
    h0 = jnp.maximum(x @ w0 + b0, 0.0)
    h1 = jnp.maximum(h0 @ w1 + b1, 0.0)
    logits = h1 @ w2 + b2
    return jax.nn.log_softmax(logits, axis=1)


def reference_forward_bf16(x_nchw, params):
    """Plain-JAX reference matching the kernel's bf16-operand / f32-accum precision."""
    w0, b0, w1, b1, w2, b2 = params
    x = x_nchw.reshape(x_nchw.shape[0], -1).astype(jnp.bfloat16)
    h0 = jnp.dot(x, w0.astype(jnp.bfloat16), preferred_element_type=jnp.float32) + b0
    h0 = jnp.maximum(h0, 0.0).astype(jnp.bfloat16)
    h1 = jnp.dot(h0, w1.astype(jnp.bfloat16), preferred_element_type=jnp.float32) + b1
    h1 = jnp.maximum(h1, 0.0).astype(jnp.bfloat16)
    logits = jnp.dot(h1, w2.astype(jnp.bfloat16), preferred_element_type=jnp.float32) + b2
    return jax.nn.log_softmax(logits, axis=1)


# ----------------------------- test ------------------------------------------

if __name__ == "__main__":
    key = jax.random.PRNGKey(0)
    kx, kp, kx2 = jax.random.split(key, 3)

    params = init_params(kp)
    prepared = prepare_params(params)   # weights cast once, not per call

    # Small-batch check (single grid step; block larger than the array).
    B = 4
    x = jax.random.normal(kx, (B, 1, 28, 28), jnp.float32)
    out = jax.block_until_ready(network_forward(x, prepared))
    assert out.shape == (B, 10)

    ref_bf16 = reference_forward_bf16(x, params)
    ref_f32 = reference_forward_f32(x, params)
    # Matched-precision reference: tight tolerance.
    assert jnp.allclose(out, ref_bf16, atol=2e-3, rtol=2e-3)
    # Full-f32 reference: loose tolerance (bf16 operand rounding).
    assert jnp.allclose(out, ref_f32, atol=1e-1, rtol=1e-1)
    # Log-softmax rows should sum to ~1 after exp.
    assert jnp.allclose(jnp.exp(out).sum(axis=1), jnp.ones((B,)), atol=1e-3)

    # Ragged multi-tile grid (no wrapper-side padding copy; OOB rows dropped).
    B2 = 300
    x_big = jax.random.normal(kx2, (B2, 1, 28, 28), jnp.float32)
    out_big = jax.block_until_ready(network_forward(x_big, prepared))
    assert out_big.shape == (B2, 10)
    ref_big = reference_forward_bf16(x_big, params)
    assert jnp.allclose(out_big, ref_big, atol=2e-3, rtol=2e-3)
    assert jnp.allclose(jnp.exp(out_big).sum(axis=1), jnp.ones((B2,)), atol=1e-3)

    print("KERNEL_OK")
</pallas_src>

<mosaic_0001>
module attributes {stable_mosaic.version = 11 : i64} {
  func.func @mlp_kernel(%arg0: i32, %arg1: memref<8x784xf32, #tpu.memory_space<vmem>>, %arg2: memref<784x128xbf16, #tpu.memory_space<vmem>>, %arg3: memref<1x128xf32, #tpu.memory_space<vmem>>, %arg4: memref<128x64xbf16, #tpu.memory_space<vmem>>, %arg5: memref<1x64xf32, #tpu.memory_space<vmem>>, %arg6: memref<64x10xbf16, #tpu.memory_space<vmem>>, %arg7: memref<1x10xf32, #tpu.memory_space<vmem>>, %arg8: memref<8x10xf32, #tpu.memory_space<vmem>>) attributes {dimension_semantics = [#tpu.dimension_semantics<parallel>], iteration_bounds = array<i64: 1>, scalar_prefetch = 0 : i64, scratch_operands = 0 : i64, tpu.core_type = #tpu.core_type<tc>, window_params = [{transform_indices = @transform_0, window_bounds = array<i64: 8, 784>}, {pipeline_mode = #tpu.pipeline_mode<synchronous>, transform_indices = @transform_1, window_bounds = array<i64: 784, 128>}, {pipeline_mode = #tpu.pipeline_mode<synchronous>, transform_indices = @transform_2, window_bounds = array<i64: 1, 128>}, {pipeline_mode = #tpu.pipeline_mode<synchronous>, transform_indices = @transform_3, window_bounds = array<i64: 128, 64>}, {pipeline_mode = #tpu.pipeline_mode<synchronous>, transform_indices = @transform_4, window_bounds = array<i64: 1, 64>}, {pipeline_mode = #tpu.pipeline_mode<synchronous>, transform_indices = @transform_5, window_bounds = array<i64: 64, 10>}, {pipeline_mode = #tpu.pipeline_mode<synchronous>, transform_indices = @transform_6, window_bounds = array<i64: 1, 10>}, {transform_indices = @transform_7, window_bounds = array<i64: 8, 10>}]} {
    %c0 = arith.constant 0 : index
    %c0_0 = arith.constant 0 : index
    %0 = vector.load %arg1[%c0, %c0_0] : memref<8x784xf32, #tpu.memory_space<vmem>>, vector<8x784xf32>
    %1 = arith.truncf %0 : vector<8x784xf32> to vector<8x784xbf16>
    %c0_1 = arith.constant 0 : index
    %c0_2 = arith.constant 0 : index
    %2 = vector.load %arg2[%c0_1, %c0_2] : memref<784x128xbf16, #tpu.memory_space<vmem>>, vector<784x128xbf16>
    %cst = arith.constant dense<0.000000e+00> : vector<8x128xf32>
    %3 = tpu.matmul %1, %2, %cst {dimension_numbers = #tpu.dot_dimension_numbers<[1], [0], [0], [1], [0, 0, 1, 1], [], []>} : vector<8x784xbf16>, vector<784x128xbf16>, vector<8x128xf32> -> vector<8x128xf32>
    %c0_3 = arith.constant 0 : index
    %c0_4 = arith.constant 0 : index
    %4 = vector.load %arg3[%c0_3, %c0_4] : memref<1x128xf32, #tpu.memory_space<vmem>>, vector<1x128xf32>
    %5 = vector.broadcast %4 : vector<1x128xf32> to vector<8x128xf32>
    %6 = arith.addf %3, %5 : vector<8x128xf32>
    %cst_5 = arith.constant 0.000000e+00 : f32
    %7 = vector.broadcast %cst_5 : f32 to vector<8x128xf32>
    %8 = arith.maximumf %6, %7 : vector<8x128xf32>
    %9 = arith.truncf %8 : vector<8x128xf32> to vector<8x128xbf16>
    %c0_6 = arith.constant 0 : index
    %c0_7 = arith.constant 0 : index
    %10 = vector.load %arg4[%c0_6, %c0_7] : memref<128x64xbf16, #tpu.memory_space<vmem>>, vector<128x64xbf16>
    %cst_8 = arith.constant dense<0.000000e+00> : vector<8x64xf32>
    %11 = tpu.matmul %9, %10, %cst_8 {dimension_numbers = #tpu.dot_dimension_numbers<[1], [0], [0], [1], [0, 0, 1, 1], [], []>} : vector<8x128xbf16>, vector<128x64xbf16>, vector<8x64xf32> -> vector<8x64xf32>
    %c0_9 = arith.constant 0 : index
    %c0_10 = arith.constant 0 : index
    %12 = vector.load %arg5[%c0_9, %c0_10] : memref<1x64xf32, #tpu.memory_space<vmem>>, vector<1x64xf32>
    %13 = vector.broadcast %12 : vector<1x64xf32> to vector<8x64xf32>
    %14 = arith.addf %11, %13 : vector<8x64xf32>
    %cst_11 = arith.constant 0.000000e+00 : f32
    %15 = vector.broadcast %cst_11 : f32 to vector<8x64xf32>
    %16 = arith.maximumf %14, %15 : vector<8x64xf32>
    %17 = arith.truncf %16 : vector<8x64xf32> to vector<8x64xbf16>
    %c0_12 = arith.constant 0 : index
    %c0_13 = arith.constant 0 : index
    %18 = vector.load %arg6[%c0_12, %c0_13] : memref<64x10xbf16, #tpu.memory_space<vmem>>, vector<64x10xbf16>
    %cst_14 = arith.constant dense<0.000000e+00> : vector<8x10xf32>
    %19 = tpu.matmul %17, %18, %cst_14 {dimension_numbers = #tpu.dot_dimension_numbers<[1], [0], [0], [1], [0, 0, 1, 1], [], []>} : vector<8x64xbf16>, vector<64x10xbf16>, vector<8x10xf32> -> vector<8x10xf32>
    %c0_15 = arith.constant 0 : index
    %c0_16 = arith.constant 0 : index
    %20 = vector.load %arg7[%c0_15, %c0_16] : memref<1x10xf32, #tpu.memory_space<vmem>>, vector<1x10xf32>
    %21 = vector.broadcast %20 : vector<1x10xf32> to vector<8x10xf32>
    %22 = arith.addf %19, %21 : vector<8x10xf32>
    %cst_17 = arith.constant dense<0xFF800000> : vector<8xf32>
    %23 = vector.multi_reduction <maximumf>, %22, %cst_17 [1] : vector<8x10xf32> to vector<8xf32>
    %24 = vector.shape_cast %23 : vector<8xf32> to vector<8x1xf32>
    %25 = vector.broadcast %24 : vector<8x1xf32> to vector<8x10xf32>
    %26 = arith.subf %22, %25 : vector<8x10xf32>
    %27 = math.exp %26 : vector<8x10xf32>
    %cst_18 = arith.constant dense<0.000000e+00> : vector<8xf32>
    %28 = vector.multi_reduction <add>, %27, %cst_18 [1] : vector<8x10xf32> to vector<8xf32>
    %29 = vector.shape_cast %28 : vector<8xf32> to vector<8x1xf32>
    %30 = math.log %29 : vector<8x1xf32>
    %31 = vector.broadcast %30 : vector<8x1xf32> to vector<8x10xf32>
    %32 = arith.subf %26, %31 : vector<8x10xf32>
    %c0_19 = arith.constant 0 : index
    %c0_20 = arith.constant 0 : index
    %33 = vector.load %arg8[%c0_19, %c0_20] : memref<8x10xf32, #tpu.memory_space<vmem>>, vector<8x10xf32>
    tpu.vector_store %arg8[%c0_19, %c0_20], %32 {strides = array<i32>} : memref<8x10xf32, #tpu.memory_space<vmem>>, vector<8x10xf32>,
    return
  }
  func.func @transform_0(%arg0: i32) -> (i32, i32) {
    %c0_i32 = arith.constant 0 : i32
    %c0_i32_0 = arith.constant 0 : i32
    return %arg0, %c0_i32 : i32, i32
  }
  func.func @transform_1(%arg0: i32) -> (i32, i32) {
    %c0_i32 = arith.constant 0 : i32
    %c0_i32_0 = arith.constant 0 : i32
    %c0_i32_1 = arith.constant 0 : i32
    return %c0_i32, %c0_i32_0 : i32, i32
  }
  func.func @transform_2(%arg0: i32) -> (i32, i32) {
    %c0_i32 = arith.constant 0 : i32
    %c0_i32_0 = arith.constant 0 : i32
    %c0_i32_1 = arith.constant 0 : i32
    return %c0_i32, %c0_i32_0 : i32, i32
  }
  func.func @transform_3(%arg0: i32) -> (i32, i32) {
    %c0_i32 = arith.constant 0 : i32
    %c0_i32_0 = arith.constant 0 : i32
    %c0_i32_1 = arith.constant 0 : i32
    return %c0_i32, %c0_i32_0 : i32, i32
  }
  func.func @transform_4(%arg0: i32) -> (i32, i32) {
    %c0_i32 = arith.constant 0 : i32
    %c0_i32_0 = arith.constant 0 : i32
    %c0_i32_1 = arith.constant 0 : i32
    return %c0_i32, %c0_i32_0 : i32, i32
  }
  func.func @transform_5(%arg0: i32) -> (i32, i32) {
    %c0_i32 = arith.constant 0 : i32
    %c0_i32_0 = arith.constant 0 : i32
    %c0_i32_1 = arith.constant 0 : i32
    return %c0_i32, %c0_i32_0 : i32, i32
  }
  func.func @transform_6(%arg0: i32) -> (i32, i32) {
    %c0_i32 = arith.constant 0 : i32
    %c0_i32_0 = arith.constant 0 : i32
    %c0_i32_1 = arith.constant 0 : i32
    return %c0_i32, %c0_i32_0 : i32, i32
  }
  func.func @transform_7(%arg0: i32) -> (i32, i32) {
    %c0_i32 = arith.constant 0 : i32
    %c0_i32_0 = arith.constant 0 : i32
    return %arg0, %c0_i32 : i32, i32
  }
}

</mosaic_0001>

<llo_original>
// kernel: tpu_custom_call.1
$region0: #{tpu_custom_call.1}
  #allocation0 [shape = 'u32[]', space=smem, size = 0x4, offset = 0x4, fixed_abs, tag = 'smem constant byte address 0x4 - core index']
  #allocation1 [shape = 'u32[72,128]{1,0:T(1,128)}', space=vmem, size = 0x9000, scoped, tag = 'internal scratch']
  %s0 = inlined_call_operand.vmem [shape: f32[4,784], index: 0, kind: input, shape index: {}]
  %s1 = inlined_call_operand.hbm [shape: bf16[784,128], index: 1, kind: input, shape index: {}]
  %s2 = inlined_call_operand.vmem [shape: f32[1,128], index: 2, kind: input, shape index: {}]
  %s3 = inlined_call_operand.vmem [shape: bf16[128,64], index: 3, kind: input, shape index: {}]
  %s4 = inlined_call_operand.vmem [shape: f32[1,64], index: 4, kind: input, shape index: {}]
  %s5 = inlined_call_operand.vmem [shape: bf16[64,10], index: 5, kind: input, shape index: {}]
  %s6 = inlined_call_operand.vmem [shape: f32[1,10], index: 6, kind: input, shape index: {}]
  %s7 = inlined_call_operand.hbm [shape: f32[4,10], index: 7, kind: output, shape index: {}]
  %s8 = sld [smem:[#allocation0]]
  $region42: #{tpu_custom_call.1} parent=0
    _
  %s10 = ssub.s32 1, %s8
  %s11 = scalar_select 0, %s10, %s8
  $region1: #{tpu_custom_call.1} parent=0
    #allocation2 [shape = 'u8[200704]{0}', space=vmem, size = 0x31000, scoped, tag = 'input window, operand 1, single buffered']
    #allocation3 [shape = 's32[1]{0}', space=sflag, size = 0x4, scoped, tag = 'scoped memory for tpu_custom_call.1']
    #allocation4 [shape = 's32[1]{0}', space=sflag, size = 0x4, scoped, tag = 'scoped memory for tpu_custom_call.1']
    #allocation5 [shape = 'u8[4096]{0}', space=vmem, size = 0x1000, scoped, tag = 'output window, operand 0, single buffered']
    %12 = vsyncpa [#allocation3], 0
    %13 = vsyncpa [#allocation4], 0
    // Predicated region
    $region2: #{tpu_custom_call.1} parent=1 // pred_check
      _
    $region3: #{tpu_custom_call.1} parent=1 // pred_check_branch
      %15 = sbr.rel (0) target = $region5
    $region4: #{tpu_custom_call.1} parent=1 // pred_region
      _
    $region5: #{tpu_custom_call.1} parent=1 // pred_fallthru
      _
    // Predicated region
    $region6: #{tpu_custom_call.1} parent=1 // pred_check
      _
    $region7: #{tpu_custom_call.1} parent=1 // pred_check_branch
      %17 = sbr.rel (0) target = $region9
    $region8: #{tpu_custom_call.1} parent=1 // pred_region
      %19 = vsyncadd [#allocation3], 0
      %s20 = sshll.u32 %s1, 4
      %s21 = int_to_ptr.hbm [resolvable:$true] %s20
      %s22 = sshll.u32 [#allocation2], 4
      %s23 = int_to_ptr.vmem [resolvable:$true] %s22
      %28 = dma.hbm_to_vmem [thread:$0]  %s21, 6272, %s23, [#allocation3], 64, 64, 4
    $region9: #{tpu_custom_call.1} parent=1 // pred_fallthru
      _
    // Predicated region
    $region10: #{tpu_custom_call.1} parent=1 // pred_check
      _
    $region11: #{tpu_custom_call.1} parent=1 // pred_check_branch
      %30 = sbr.rel (0) target = $region13
    $region12: #{tpu_custom_call.1} parent=1 // pred_region
      _
    $region13: #{tpu_custom_call.1} parent=1 // pred_fallthru
      _
    // Predicated region
    $region14: #{tpu_custom_call.1} parent=1 // pred_check
      _
    $region15: #{tpu_custom_call.1} parent=1 // pred_check_branch
      %32 = sbr.rel (0) target = $region17
    $region16: #{tpu_custom_call.1} parent=1 // pred_region
      _
    $region17: #{tpu_custom_call.1} parent=1 // pred_fallthru
      _
    // Predicated region
    $region18: #{tpu_custom_call.1} parent=1 // pred_check
      _
    $region19: #{tpu_custom_call.1} parent=1 // pred_check_branch
      %34 = sbr.rel (0) target = $region21
    $region20: #{tpu_custom_call.1} parent=1 // pred_region
      _
    $region21: #{tpu_custom_call.1} parent=1 // pred_fallthru
      _
    // Predicated region
    $region22: #{tpu_custom_call.1} parent=1 // pred_check
      _
    $region23: #{tpu_custom_call.1} parent=1 // pred_check_branch
      %36 = sbr.rel (0) target = $region25
    $region24: #{tpu_custom_call.1} parent=1 // pred_region
      _
    $region25: #{tpu_custom_call.1} parent=1 // pred_fallthru
      _
    // Predicated region
    $region26: #{tpu_custom_call.1} parent=1 // pred_check
      _
    $region27: #{tpu_custom_call.1} parent=1 // pred_check_branch
      %38 = sbr.rel (0) target = $region29
    $region28: #{tpu_custom_call.1} parent=1 // pred_region
      _
    $region29: #{tpu_custom_call.1} parent=1 // pred_fallthru
      _
    // Predicated region
    $region30: #{tpu_custom_call.1} parent=1 // pred_check
      _
    $region31: #{tpu_custom_call.1} parent=1 // pred_check_branch
      %40 = sbr.rel (0) target = $region33
    $region32: #{tpu_custom_call.1} parent=1 // pred_region
      %42 = dma.done [#allocation3], 6272
    $region33: #{tpu_custom_call.1} parent=1 // pred_fallthru
      _
    %v44 = vld [vmem:[%s0] sm:$0xff]
    %v45 = vld [vmem:[%s0 + $0x8] sm:$0xff]
    %v46 = vld [vmem:[%s0 + $0x10] sm:$0xff]
    %v47 = vld [vmem:[%s0 + $0x18] sm:$0xf]
    %v48 = vld [vmem:[%s0 + $0x1c] sm:$0xff]
    %v49 = vld [vmem:[%s0 + $0x24] sm:$0xff]
    %v50 = vld [vmem:[%s0 + $0x2c] sm:$0xff]
    %v51 = vld [vmem:[%s0 + $0x34] sm:$0xf]
    %60 = vst [vmem:[#allocation1] ss:$2 sm:$0xff] %v44
    %s61 = scalar_lea.vmem [#allocation1], 1
    %62 = vst [vmem:[%s61] ss:$2 sm:$0xff] %v48
    %s63 = scalar_lea.vmem [#allocation1], 16
    %64 = vst [vmem:[%s63] ss:$2 sm:$0xff] %v45
    %s65 = scalar_lea.vmem [#allocation1], 17
    %66 = vst [vmem:[%s65] ss:$2 sm:$0xff] %v49
    %s67 = scalar_lea.vmem [#allocation1], 32
    %68 = vst [vmem:[%s67] ss:$2 sm:$0xff] %v46
    %s69 = scalar_lea.vmem [#allocation1], 33
    %70 = vst [vmem:[%s69] ss:$2 sm:$0xff] %v50
    %s71 = scalar_lea.vmem [#allocation1], 48
    %72 = vst [vmem:[%s71] ss:$2 sm:$0xff] %v47
    %s73 = scalar_lea.vmem [#allocation1], 49
    %74 = vst [vmem:[%s73] ss:$2 sm:$0xff] %v51
    %v75 = vld.sshfl [vmem:[#allocation1] sm:$0xff pattern:$0x75316420]
    %v76 = vld.sshfl [vmem:[#allocation1 + $0x8] sm:$0xff pattern:$0x75316420]
    %v77 = vld.sshfl [vmem:[#allocation1 + $0x10] sm:$0xff pattern:$0x75316420]
    %v78 = vld.sshfl [vmem:[#allocation1 + $0x18] sm:$0xff pattern:$0x75316420]
    %v79 = vld.sshfl [vmem:[#allocation1 + $0x20] sm:$0xff pattern:$0x75316420]
    %v80 = vld.sshfl [vmem:[#allocation1 + $0x28] sm:$0xff pattern:$0x75316420]
    %v81 = vld.sshfl [vmem:[#allocation1 + $0x30] sm:$0xff pattern:$0x75316420]
    %v89 = vpack.c.bf16 %v75, %v75
    %v90 = vpack.c.bf16 %v76, %v76
    %v91 = vpack.c.bf16 %v77, %v77
    %v92 = vpack.c.bf16 %v78, %v78
    %v93 = vpack.c.bf16 %v79, %v79
    %v94 = vpack.c.bf16 %v80, %v80
    %v95 = vpack.c.bf16 %v81, %v81
    %v96 = vld [vmem:[#allocation2] sm:$0xf]
    %v97 = vld [vmem:[#allocation2 + $0x4] sm:$0xf]
    %v98 = vld [vmem:[#allocation2 + $0x8] sm:$0xf]
    %v99 = vld [vmem:[#allocation2 + $0xc] sm:$0xf]
    %v100 = vld [vmem:[#allocation2 + $0x10] sm:$0xf]
    %v101 = vld [vmem:[#allocation2 + $0x14] sm:$0xf]
    %v102 = vld [vmem:[#allocation2 + $0x18] sm:$0xf]
    %v103 = vld [vmem:[#allocation2 + $0x1c] sm:$0xf]
    %v104 = vld [vmem:[#allocation2 + $0x20] sm:$0xf]
    %v105 = vld [vmem:[#allocation2 + $0x24] sm:$0xf]
    %v106 = vld [vmem:[#allocation2 + $0x28] sm:$0xf]
    %v107 = vld [vmem:[#allocation2 + $0x2c] sm:$0xf]
    %v108 = vld [vmem:[#allocation2 + $0x30] sm:$0xf]
    %v109 = vld [vmem:[#allocation2 + $0x34] sm:$0xf]
    %v110 = vld [vmem:[#allocation2 + $0x38] sm:$0xf]
    %v111 = vld [vmem:[#allocation2 + $0x3c] sm:$0xf]
    %v112 = vld [vmem:[#allocation2 + $0x40] sm:$0xf]
    %v113 = vld [vmem:[#allocation2 + $0x44] sm:$0xf]
    %v114 = vld [vmem:[#allocation2 + $0x48] sm:$0xf]
    %v115 = vld [vmem:[#allocation2 + $0x4c] sm:$0xf]
    %v116 = vld [vmem:[#allocation2 + $0x50] sm:$0xf]
    %v117 = vld [vmem:[#allocation2 + $0x54] sm:$0xf]
    %v118 = vld [vmem:[#allocation2 + $0x58] sm:$0xf]
    %v119 = vld [vmem:[#allocation2 + $0x5c] sm:$0xf]
    %v120 = vld [vmem:[#allocation2 + $0x60] sm:$0xf]
    %v121 = vld [vmem:[#allocation2 + $0x64] sm:$0xf]
    %v122 = vld [vmem:[#allocation2 + $0x68] sm:$0xf]
    %v123 = vld [vmem:[#allocation2 + $0x6c] sm:$0xf]
    %v124 = vld [vmem:[#allocation2 + $0x70] sm:$0xf]
    %v125 = vld [vmem:[#allocation2 + $0x74] sm:$0xf]
    %v126 = vld [vmem:[#allocation2 + $0x78] sm:$0xf]
    %v127 = vld [vmem:[#allocation2 + $0x7c] sm:$0xf]
    %v128 = vld [vmem:[#allocation2 + $0x80] sm:$0xf]
    %v129 = vld [vmem:[#allocation2 + $0x84] sm:$0xf]
    %v130 = vld [vmem:[#allocation2 + $0x88] sm:$0xf]
    %v131 = vld [vmem:[#allocation2 + $0x8c] sm:$0xf]
    %v132 = vld [vmem:[#allocation2 + $0x90] sm:$0xf]
    %v133 = vld [vmem:[#allocation2 + $0x94] sm:$0xf]
    %v134 = vld [vmem:[#allocation2 + $0x98] sm:$0xf]
    %v135 = vld [vmem:[#allocation2 + $0x9c] sm:$0xf]
    %v136 = vld [vmem:[#allocation2 + $0xa0] sm:$0xf]
    %v137 = vld [vmem:[#allocation2 + $0xa4] sm:$0xf]
    %v138 = vld [vmem:[#allocation2 + $0xa8] sm:$0xf]
    %v139 = vld [vmem:[#allocation2 + $0xac] sm:$0xf]
    %v140 = vld [vmem:[#allocation2 + $0xb0] sm:$0xf]
    %v141 = vld [vmem:[#allocation2 + $0xb4] sm:$0xf]
    %v142 = vld [vmem:[#allocation2 + $0xb8] sm:$0xf]
    %v143 = vld [vmem:[#allocation2 + $0xbc] sm:$0xf]
    %v144 = vld [vmem:[#allocation2 + $0xc0] sm:$0xf]
    %v145 = vld [vmem:[#allocation2 + $0xc4] sm:$0xf]
    %v146 = vld [vmem:[#allocation2 + $0xc8] sm:$0xf]
    %v147 = vld [vmem:[#allocation2 + $0xcc] sm:$0xf]
    %v148 = vld [vmem:[#allocation2 + $0xd0] sm:$0xf]
    %v149 = vld [vmem:[#allocation2 + $0xd4] sm:$0xf]
    %v150 = vld [vmem:[#allocation2 + $0xd8] sm:$0xf]
    %v151 = vld [vmem:[#allocation2 + $0xdc] sm:$0xf]
    %v152 = vld [vmem:[#allocation2 + $0xe0] sm:$0xf]
    %v153 = vld [vmem:[#allocation2 + $0xe4] sm:$0xf]
    %v154 = vld [vmem:[#allocation2 + $0xe8] sm:$0xf]
    %v155 = vld [vmem:[#allocation2 + $0xec] sm:$0xf]
    %v156 = vld [vmem:[#allocation2 + $0xf0] sm:$0xf]
    %v157 = vld [vmem:[#allocation2 + $0xf4] sm:$0xf]
    %v158 = vld [vmem:[#allocation2 + $0xf8] sm:$0xf]
    %v159 = vld [vmem:[#allocation2 + $0xfc] sm:$0xf]
    %v160 = vld [vmem:[#allocation2 + $0x100] sm:$0xf]
    %v161 = vld [vmem:[#allocation2 + $0x104] sm:$0xf]
    %v162 = vld [vmem:[#allocation2 + $0x108] sm:$0xf]
    %v163 = vld [vmem:[#allocation2 + $0x10c] sm:$0xf]
    %v164 = vld [vmem:[#allocation2 + $0x110] sm:$0xf]
    %v165 = vld [vmem:[#allocation2 + $0x114] sm:$0xf]
    %v166 = vld [vmem:[#allocation2 + $0x118] sm:$0xf]
    %v167 = vld [vmem:[#allocation2 + $0x11c] sm:$0xf]
    %v168 = vld [vmem:[#allocation2 + $0x120] sm:$0xf]
    %v169 = vld [vmem:[#allocation2 + $0x124] sm:$0xf]
    %v170 = vld [vmem:[#allocation2 + $0x128] sm:$0xf]
    %v171 = vld [vmem:[#allocation2 + $0x12c] sm:$0xf]
    %v172 = vld [vmem:[#allocation2 + $0x130] sm:$0xf]
    %v173 = vld [vmem:[#allocation2 + $0x134] sm:$0xf]
    %v174 = vld [vmem:[#allocation2 + $0x138] sm:$0xf]
    %v175 = vld [vmem:[#allocation2 + $0x13c] sm:$0xf]
    %v176 = vld [vmem:[#allocation2 + $0x140] sm:$0xf]
    %v177 = vld [vmem:[#allocation2 + $0x144] sm:$0xf]
    %v178 = vld [vmem:[#allocation2 + $0x148] sm:$0xf]
    %v179 = vld [vmem:[#allocation2 + $0x14c] sm:$0xf]
    %v180 = vld [vmem:[#allocation2 + $0x150] sm:$0xf]
    %v181 = vld [vmem:[#allocation2 + $0x154] sm:$0xf]
    %v182 = vld [vmem:[#allocation2 + $0x158] sm:$0xf]
    %v183 = vld [vmem:[#allocation2 + $0x15c] sm:$0xf]
    %v184 = vld [vmem:[#allocation2 + $0x160] sm:$0xf]
    %v185 = vld [vmem:[#allocation2 + $0x164] sm:$0xf]
    %v186 = vld [vmem:[#allocation2 + $0x168] sm:$0xf]
    %v187 = vld [vmem:[#allocation2 + $0x16c] sm:$0xf]
    %v188 = vld [vmem:[#allocation2 + $0x170] sm:$0xf]
    %v189 = vld [vmem:[#allocation2 + $0x174] sm:$0xf]
    %v190 = vld [vmem:[#allocation2 + $0x178] sm:$0xf]
    %v191 = vld [vmem:[#allocation2 + $0x17c] sm:$0xf]
    %v192 = vld [vmem:[#allocation2 + $0x180] sm:$0xf]
    %v193 = vld [vmem:[#allocation2 + $0x184] sm:$0xf]
    %v194 = vld [vmem:[%s2] sm:$0x1]
    %v196 = vperm.slane %v194, 0
    %v296 = vunpack.c.l.b16 %v96
    %v297 = vunpack.c.l.b16 %v97
    %v298 = vunpack.c.l.b16 %v98
    %v299 = vunpack.c.l.b16 %v99
    %v300 = vunpack.c.l.b16 %v100
    %v301 = vunpack.c.l.b16 %v101
    %v302 = vunpack.c.l.b16 %v102
    %v303 = vunpack.c.l.b16 %v103
    %v304 = vunpack.c.l.b16 %v104
    %v305 = vunpack.c.l.b16 %v105
    %v306 = vunpack.c.l.b16 %v106
    %v307 = vunpack.c.l.b16 %v107
    %v308 = vunpack.c.l.b16 %v108
    %v309 = vunpack.c.l.b16 %v109
    %v310 = vunpack.c.l.b16 %v110
    %v311 = vunpack.c.l.b16 %v111
    %v312 = vunpack.c.l.b16 %v112
    %v313 = vunpack.c.l.b16 %v113
    %v314 = vunpack.c.l.b16 %v114
    %v315 = vunpack.c.l.b16 %v115
    %v316 = vunpack.c.l.b16 %v116
    %v317 = vunpack.c.l.b16 %v117
    %v318 = vunpack.c.l.b16 %v118
    %v319 = vunpack.c.l.b16 %v119
    %v320 = vunpack.c.l.b16 %v120
    %v321 = vunpack.c.l.b16 %v121
    %v322 = vunpack.c.l.b16 %v122
    %v323 = vunpack.c.l.b16 %v123
    %v324 = vunpack.c.l.b16 %v124
    %v325 = vunpack.c.l.b16 %v125
    %v326 = vunpack.c.l.b16 %v126
    %v327 = vunpack.c.l.b16 %v127
    %v328 = vunpack.c.l.b16 %v128
    %v329 = vunpack.c.l.b16 %v129
    %v330 = vunpack.c.l.b16 %v130
    %v331 = vunpack.c.l.b16 %v131
    %v332 = vunpack.c.l.b16 %v132
    %v333 = vunpack.c.l.b16 %v133
    %v334 = vunpack.c.l.b16 %v134
    %v335 = vunpack.c.l.b16 %v135
    %v336 = vunpack.c.l.b16 %v136
    %v337 = vunpack.c.l.b16 %v137
    %v338 = vunpack.c.l.b16 %v138
    %v339 = vunpack.c.l.b16 %v139
    %v340 = vunpack.c.l.b16 %v140
    %v341 = vunpack.c.l.b16 %v141
    %v342 = vunpack.c.l.b16 %v142
    %v343 = vunpack.c.l.b16 %v143
    %v344 = vunpack.c.l.b16 %v144
    %v345 = vunpack.c.l.b16 %v145
    %v346 = vunpack.c.l.b16 %v146
    %v347 = vunpack.c.l.b16 %v147
    %v348 = vunpack.c.l.b16 %v148
    %v349 = vunpack.c.l.b16 %v149
    %v350 = vunpack.c.l.b16 %v150
    %v351 = vunpack.c.l.b16 %v151
    %v352 = vunpack.c.l.b16 %v152
    %v353 = vunpack.c.l.b16 %v153
    %v354 = vunpack.c.l.b16 %v154
    %v355 = vunpack.c.l.b16 %v155
    %v356 = vunpack.c.l.b16 %v156
    %v357 = vunpack.c.l.b16 %v157
    %v358 = vunpack.c.l.b16 %v158
    %v359 = vunpack.c.l.b16 %v159
    %v360 = vunpack.c.l.b16 %v160
    %v361 = vunpack.c.l.b16 %v161
    %v362 = vunpack.c.l.b16 %v162
    %v363 = vunpack.c.l.b16 %v163
    %v364 = vunpack.c.l.b16 %v164
    %v365 = vunpack.c.l.b16 %v165
    %v366 = vunpack.c.l.b16 %v166
    %v367 = vunpack.c.l.b16 %v167
    %v368 = vunpack.c.l.b16 %v168
    %v369 = vunpack.c.l.b16 %v169
    %v370 = vunpack.c.l.b16 %v170
    %v371 = vunpack.c.l.b16 %v171
    %v372 = vunpack.c.l.b16 %v172
    %v373 = vunpack.c.l.b16 %v173
    %v374 = vunpack.c.l.b16 %v174
    %v375 = vunpack.c.l.b16 %v175
    %v376 = vunpack.c.l.b16 %v176
    %v377 = vunpack.c.l.b16 %v177
    %v378 = vunpack.c.l.b16 %v178
    %v379 = vunpack.c.l.b16 %v179
    %v380 = vunpack.c.l.b16 %v180
    %v381 = vunpack.c.l.b16 %v181
    %v382 = vunpack.c.l.b16 %v182
    %v383 = vunpack.c.l.b16 %v183
    %v384 = vunpack.c.l.b16 %v184
    %v385 = vunpack.c.l.b16 %v185
    %v386 = vunpack.c.l.b16 %v186
    %v387 = vunpack.c.l.b16 %v187
    %v388 = vunpack.c.l.b16 %v188
    %v389 = vunpack.c.l.b16 %v189
    %v390 = vunpack.c.l.b16 %v190
    %v391 = vunpack.c.l.b16 %v191
    %v392 = vunpack.c.l.b16 %v192
    %v393 = vunpack.c.l.b16 %v193
    %v394 = vpack.c.b16 %v297, %v296
    %v395 = vpack.c.b16 %v299, %v298
    %v396 = vpack.c.b16 %v301, %v300
    %v397 = vpack.c.b16 %v303, %v302
    %v398 = vpack.c.b16 %v305, %v304
    %v399 = vpack.c.b16 %v307, %v306
    %v400 = vpack.c.b16 %v309, %v308
    %v401 = vpack.c.b16 %v311, %v310
    %v402 = vpack.c.b16 %v313, %v312
    %v403 = vpack.c.b16 %v315, %v314
    %v404 = vpack.c.b16 %v317, %v316
    %v405 = vpack.c.b16 %v319, %v318
    %v406 = vpack.c.b16 %v321, %v320
    %v407 = vpack.c.b16 %v323, %v322
    %v408 = vpack.c.b16 %v325, %v324
    %v409 = vpack.c.b16 %v327, %v326
    %v410 = vpack.c.b16 %v329, %v328
    %v411 = vpack.c.b16 %v331, %v330
    %v412 = vpack.c.b16 %v333, %v332
    %v413 = vpack.c.b16 %v335, %v334
    %v414 = vpack.c.b16 %v337, %v336
    %v415 = vpack.c.b16 %v339, %v338
    %v416 = vpack.c.b16 %v341, %v340
    %v417 = vpack.c.b16 %v343, %v342
    %v418 = vpack.c.b16 %v345, %v344
    %v419 = vpack.c.b16 %v347, %v346
    %v420 = vpack.c.b16 %v349, %v348
    %v421 = vpack.c.b16 %v351, %v350
    %v422 = vpack.c.b16 %v353, %v352
    %v423 = vpack.c.b16 %v355, %v354
    %v424 = vpack.c.b16 %v357, %v356
    %v425 = vpack.c.b16 %v359, %v358
    %v426 = vpack.c.b16 %v361, %v360
    %v427 = vpack.c.b16 %v363, %v362
    %v428 = vpack.c.b16 %v365, %v364
    %v429 = vpack.c.b16 %v367, %v366
    %v430 = vpack.c.b16 %v369, %v368
    %v431 = vpack.c.b16 %v371, %v370
    %v432 = vpack.c.b16 %v373, %v372
    %v433 = vpack.c.b16 %v375, %v374
    %v434 = vpack.c.b16 %v377, %v376
    %v435 = vpack.c.b16 %v379, %v378
    %v436 = vpack.c.b16 %v381, %v380
    %v437 = vpack.c.b16 %v383, %v382
    %v438 = vpack.c.b16 %v385, %v384
    %v439 = vpack.c.b16 %v387, %v386
    %v440 = vpack.c.b16 %v389, %v388
    %v441 = vpack.c.b16 %v391, %v390
    %v442 = vpack.c.b16 %v393, %v392
    %vm492 = vcmask 130048
    %v494 = vsel %vm492, %v95, 0
    %496 = vmatpush.bf16.msra.mxu0 %v401
    %497 = vmatpush.bf16.msra.mxu0 %v400
    %498 = vmatpush.bf16.msra.mxu0 %v399
    %499 = vmatpush.bf16.msra.mxu0 %v398
    %500 = vmatpush.bf16.msra.mxu0 %v397
    %501 = vmatpush.bf16.msra.mxu0 %v396
    %502 = vmatpush.bf16.msra.mxu0 %v395
    %503 = vmatpush.bf16.msra.mxu0 %v394
    %504 = vmatmul.bf16.gmra.mxu0 %v89
    %v505 = vpop.f32.mrf.mxu0
    %v506 = vadd.f32 %v196, %v505
    %v507 = vpop.f32.mrf.mxu0
    %508 = vdwg.mxu0
    %509 = vmatpush.bf16.msra.mxu0 %v409
    %510 = vmatpush.bf16.msra.mxu0 %v408
    %511 = vmatpush.bf16.msra.mxu0 %v407
    %512 = vmatpush.bf16.msra.mxu0 %v406
    %513 = vmatpush.bf16.msra.mxu0 %v405
    %514 = vmatpush.bf16.msra.mxu0 %v404
    %515 = vmatpush.bf16.msra.mxu0 %v403
    %516 = vmatpush.bf16.msra.mxu0 %v402
    %517 = vmatmul.bf16.gmra.mxu0 %v90
    %v518 = vpop.f32.mrf.mxu0
    %v519 = vadd.f32 %v506, %v518
    %v520 = vpop.f32.mrf.mxu0
    %521 = vdwg.mxu0
    %522 = vmatpush.bf16.msra.mxu0 %v417
    %523 = vmatpush.bf16.msra.mxu0 %v416
    %524 = vmatpush.bf16.msra.mxu0 %v415
    %525 = vmatpush.bf16.msra.mxu0 %v414
    %526 = vmatpush.bf16.msra.mxu0 %v413
    %527 = vmatpush.bf16.msra.mxu0 %v412
    %528 = vmatpush.bf16.msra.mxu0 %v411
    %529 = vmatpush.bf16.msra.mxu0 %v410
    %530 = vmatmul.bf16.gmra.mxu0 %v91
    %v531 = vpop.f32.mrf.mxu0
    %v532 = vadd.f32 %v519, %v531
    %v533 = vpop.f32.mrf.mxu0
    %534 = vdwg.mxu0
    %535 = vmatpush.bf16.msra.mxu0 %v425
    %536 = vmatpush.bf16.msra.mxu0 %v424
    %537 = vmatpush.bf16.msra.mxu0 %v423
    %538 = vmatpush.bf16.msra.mxu0 %v422
    %539 = vmatpush.bf16.msra.mxu0 %v421
    %540 = vmatpush.bf16.msra.mxu0 %v420
    %541 = vmatpush.bf16.msra.mxu0 %v419
    %542 = vmatpush.bf16.msra.mxu0 %v418
    %543 = vmatmul.bf16.gmra.mxu0 %v92
    %v544 = vpop.f32.mrf.mxu0
    %v545 = vadd.f32 %v532, %v544
    %v546 = vpop.f32.mrf.mxu0
    %547 = vdwg.mxu0
    %548 = vmatpush.bf16.msra.mxu0 %v433
    %549 = vmatpush.bf16.msra.mxu0 %v432
    %550 = vmatpush.bf16.msra.mxu0 %v431
    %551 = vmatpush.bf16.msra.mxu0 %v430
    %552 = vmatpush.bf16.msra.mxu0 %v429
    %553 = vmatpush.bf16.msra.mxu0 %v428
    %554 = vmatpush.bf16.msra.mxu0 %v427
    %555 = vmatpush.bf16.msra.mxu0 %v426
    %556 = vmatmul.bf16.gmra.mxu0 %v93
    %v557 = vpop.f32.mrf.mxu0
    %v558 = vadd.f32 %v545, %v557
    %v559 = vpop.f32.mrf.mxu0
    %560 = vdwg.mxu0
    %561 = vmatpush.bf16.msra.mxu0 %v441
    %562 = vmatpush.bf16.msra.mxu0 %v440
    %563 = vmatpush.bf16.msra.mxu0 %v439
    %564 = vmatpush.bf16.msra.mxu0 %v438
    %565 = vmatpush.bf16.msra.mxu0 %v437
    %566 = vmatpush.bf16.msra.mxu0 %v436
    %567 = vmatpush.bf16.msra.mxu0 %v435
    %568 = vmatpush.bf16.msra.mxu0 %v434
    %569 = vmatmul.bf16.gmra.mxu0 %v94
    %v570 = vpop.f32.mrf.mxu0
    %v571 = vadd.f32 %v558, %v570
    %v572 = vpop.f32.mrf.mxu0
    %573 = vdwg.mxu0
    %574 = vmatpush.bf16.msra.mxu0 0
    %575 = vmatpush.bf16.msra.mxu0 0
    %576 = vmatpush.bf16.msra.mxu0 0
    %577 = vmatpush.bf16.msra.mxu0 0
    %578 = vmatpush.bf16.msra.mxu0 0
    %579 = vmatpush.bf16.msra.mxu0 0
    %580 = vmatpush.bf16.msra.mxu0 0
    %581 = vmatpush.bf16.msra.mxu0 %v442
    %582 = vmatmul.bf16.gmra.mxu0 %v494
    %v583 = vpop.f32.mrf.mxu0
    %v584 = vadd.f32 %v571, %v583
    %v585 = vpop.f32.mrf.mxu0
    %586 = vdwg.mxu0
    %v587 = vmax.f32 %v584, 0.0
    %v588 = vpack.c.bf16 %v587, %v587
    %v589 = vld [vmem:[%s3] sm:$0xf]
    %v590 = vld [vmem:[%s3 + $0x4] sm:$0xf]
    %v591 = vld [vmem:[%s3 + $0x8] sm:$0xf]
    %v592 = vld [vmem:[%s3 + $0xc] sm:$0xf]
    %v593 = vld [vmem:[%s3 + $0x10] sm:$0xf]
    %v594 = vld [vmem:[%s3 + $0x14] sm:$0xf]
    %v595 = vld [vmem:[%s3 + $0x18] sm:$0xf]
    %v596 = vld [vmem:[%s3 + $0x1c] sm:$0xf]
    %v597 = vld [vmem:[%s3 + $0x20] sm:$0xf]
    %v598 = vld [vmem:[%s3 + $0x24] sm:$0xf]
    %v599 = vld [vmem:[%s3 + $0x28] sm:$0xf]
    %v600 = vld [vmem:[%s3 + $0x2c] sm:$0xf]
    %v601 = vld [vmem:[%s3 + $0x30] sm:$0xf]
    %v602 = vld [vmem:[%s3 + $0x34] sm:$0xf]
    %v603 = vld [vmem:[%s3 + $0x38] sm:$0xf]
    %v604 = vld [vmem:[%s3 + $0x3c] sm:$0xf]
    %v605 = vld [vmem:[%s4] sm:$0x1]
    %v607 = vperm.slane %v605, 0
    %v625 = vunpack.c.l.b16 %v589
    %v626 = vunpack.c.l.b16 %v590
    %v627 = vunpack.c.l.b16 %v591
    %v628 = vunpack.c.l.b16 %v592
    %v629 = vunpack.c.l.b16 %v593
    %v630 = vunpack.c.l.b16 %v594
    %v631 = vunpack.c.l.b16 %v595
    %v632 = vunpack.c.l.b16 %v596
    %v633 = vunpack.c.l.b16 %v597
    %v634 = vunpack.c.l.b16 %v598
    %v635 = vunpack.c.l.b16 %v599
    %v636 = vunpack.c.l.b16 %v600
    %v637 = vunpack.c.l.b16 %v601
    %v638 = vunpack.c.l.b16 %v602
    %v639 = vunpack.c.l.b16 %v603
    %v640 = vunpack.c.l.b16 %v604
    %v641 = vpack.c.b16 %v626, %v625
    %v642 = vpack.c.b16 %v628, %v627
    %v643 = vpack.c.b16 %v630, %v629
    %v644 = vpack.c.b16 %v632, %v631
    %v645 = vpack.c.b16 %v634, %v633
    %v646 = vpack.c.b16 %v636, %v635
    %v647 = vpack.c.b16 %v638, %v637
    %v648 = vpack.c.b16 %v640, %v639
    %657 = vmatpush.bf16.msra.mxu0 %v648
    %658 = vmatpush.bf16.msra.mxu0 %v647
    %659 = vmatpush.bf16.msra.mxu0 %v646
    %660 = vmatpush.bf16.msra.mxu0 %v645
    %661 = vmatpush.bf16.msra.mxu0 %v644
    %662 = vmatpush.bf16.msra.mxu0 %v643
    %663 = vmatpush.bf16.msra.mxu0 %v642
    %664 = vmatpush.bf16.msra.mxu0 %v641
    %665 = vmatmul.bf16.gmra.mxu0 %v588
    %v666 = vpop.f32.mrf.mxu0
    %v667 = vadd.f32 %v607, %v666
    %v668 = vpop.f32.mrf.mxu0
    %669 = vdwg.mxu0
    %v670 = vmax.f32 %v667, 0.0
    %v671 = vpack.c.bf16 %v670, %v670
    %v672 = vld [vmem:[%s5] sm:$0xf]
    %v673 = vld [vmem:[%s5 + $0x4] sm:$0xf]
    %v674 = vld [vmem:[%s5 + $0x8] sm:$0xf]
    %v675 = vld [vmem:[%s5 + $0xc] sm:$0xf]
    %v676 = vld [vmem:[%s5 + $0x10] sm:$0xf]
    %v677 = vld [vmem:[%s5 + $0x14] sm:$0xf]
    %v678 = vld [vmem:[%s5 + $0x18] sm:$0xf]
    %v679 = vld [vmem:[%s5 + $0x1c] sm:$0xf]
    %v680 = vld [vmem:[%s6] sm:$0x1]
    %v682 = vperm.slane %v680, 0
    %v692 = vunpack.c.l.b16 %v672
    %v693 = vunpack.c.l.b16 %v673
    %v694 = vunpack.c.l.b16 %v674
    %v695 = vunpack.c.l.b16 %v675
    %v696 = vunpack.c.l.b16 %v676
    %v697 = vunpack.c.l.b16 %v677
    %v698 = vunpack.c.l.b16 %v678
    %v699 = vunpack.c.l.b16 %v679
    %v700 = vpack.c.b16 %v693, %v692
    %v701 = vpack.c.b16 %v695, %v694
    %v702 = vpack.c.b16 %v697, %v696
    %v703 = vpack.c.b16 %v699, %v698
    %vm708 = vcmask 523264
    %v710 = vsel %vm708, %v671, 0
    %712 = vmatpush.bf16.msra.mxu0 0
    %713 = vmatpush.bf16.msra.mxu0 0
    %714 = vmatpush.bf16.msra.mxu0 0
    %715 = vmatpush.bf16.msra.mxu0 0
    %716 = vmatpush.bf16.msra.mxu0 %v703
    %717 = vmatpush.bf16.msra.mxu0 %v702
    %718 = vmatpush.bf16.msra.mxu0 %v701
    %719 = vmatpush.bf16.msra.mxu0 %v700
    %720 = vmatmul.bf16.gmra.mxu0 %v710
    %v721 = vpop.f32.mrf.mxu0
    %v722 = vadd.f32 %v682, %v721
    %v723 = vpop.f32.mrf.mxu0
    %724 = vdwg.mxu0
    %vm725 = vcmask 80896
    %v726 = vsel %vm725, %v722, -inf
    %727 = vmax.xlane.f32.xlu0 %v726
    %v728 = vpop.xlane.xlu0 %727
    %v729 = vsub.f32 %v722, %v728
    %v730 = vmul.f32 %v729, 1.442695
    %v731 = vpow.pop %v730
    %v732 = vsel %vm725, %v731, 0.0
    %733 = vadd.xlane.f32.xlu0 %v732
    %v734 = vpop.xlane.xlu0 %733
    %v735 = vlog2.pop %v734
    %v736 = vmul.f32 %v735, 0.6931472
    %v737 = vsub.f32 %v729, %v736
    %738 = vst.msk [vmem:[#allocation5] sm:$0xff] %vm725, %v737
    // Predicated region
    $region34: #{tpu_custom_call.1} parent=1 // pred_check
      _
    $region35: #{tpu_custom_call.1} parent=1 // pred_check_branch
      %740 = sbr.rel (0) target = $region37
    $region36: #{tpu_custom_call.1} parent=1 // pred_region
      %742 = vsyncadd [#allocation4], 64
      %s743 = sshll.u32 [#allocation5], 4
      %s744 = int_to_ptr.vmem [resolvable:$true] %s743
      %s745 = sshll.u32 %s7, 4
      %s746 = int_to_ptr.hbm [resolvable:$true] %s745
      %751 = dma.vmem_to_hbm [thread:$0]  %s744, 64, %s746, [#allocation4], 64, 64, 4
    $region37: #{tpu_custom_call.1} parent=1 // pred_fallthru
      _
    // Predicated region
    $region38: #{tpu_custom_call.1} parent=1 // pred_check
      _
    $region39: #{tpu_custom_call.1} parent=1 // pred_check_branch
      %753 = sbr.rel (0) target = $region41
    $region40: #{tpu_custom_call.1} parent=1 // pred_region
      %755 = dma.done [#allocation4], 128
    $region41: #{tpu_custom_call.1} parent=1 // pred_fallthru
      _
    %756 = vsyncpa [#allocation3], 1
    %757 = vsyncpa [#allocation4], 1

</llo_original>
